<compile_context>
chip_gen: v5e
topology: v5e:2x2
jax: 0.10.0
libtpu: 0.0.40
codegen_flags: <defaults>
</compile_context>

<pallas_src>
import functools

import jax
import jax.numpy as jnp
from jax.experimental import pallas as pl
from jax.experimental.pallas import tpu as pltpu

_BN_EPS = 1e-5


def _encoder_cnn_kernel(feat_ref, w_ref, gamma_ref, beta_ref, out_ref, acc_ref,
                        *, inv_hw):
    # feat_ref : (B, HW, C_tile)  bf16 (lane axis = C, lane-dense)
    # w_ref    : (C_tile, E_pad)  bf16 (Linear weight, stored transposed)
    # gamma_ref: (1, E_pad)       f32  (BatchNorm1d weight)
    # beta_ref : (1, E_pad)       f32  (BatchNorm1d bias)
    # out_ref  : (B, E_pad)       f32
    # acc_ref  : (B, E_pad)       f32  VMEM scratch, persists across the C grid
    k = pl.program_id(0)

    @pl.when(k == 0)
    def _init():
        acc_ref[...] = jnp.zeros_like(acc_ref)

    b, hw, c_tile = feat_ref.shape
    e_pad = w_ref.shape[1]

    # Average pool folded into the matmul: contract C on the MXU for every
    # spatial row, then reduce HW in f32. (Linear bias intentionally omitted:
    # train-mode BatchNorm's mean subtraction cancels it exactly.)
    feat2d = feat_ref[...].reshape(b * hw, c_tile)               # (B*HW, C_tile)
    z = jnp.dot(feat2d, w_ref[...],
                preferred_element_type=jnp.float32)              # (B*HW, E_pad)
    acc_ref[...] += z.reshape(b, hw, e_pad).sum(axis=1)          # (B, E_pad)

    @pl.when(k == pl.num_programs(0) - 1)
    def _finalize():
        zb = acc_ref[...] * inv_hw                               # finish avg pool
        mu = jnp.mean(zb, axis=0, keepdims=True)                 # (1, E_pad)
        zc = zb - mu
        var = jnp.mean(zc * zc, axis=0, keepdims=True)           # biased variance
        scale = gamma_ref[...] * jax.lax.rsqrt(var + _BN_EPS)
        out_ref[...] = zc * scale + beta_ref[...]


def _pick_c_tile(c, b, hw, itemsize, budget_bytes=8 * 2**20):
    # Largest multiple of 128 that divides C and keeps one feature tile under
    # ~8 MiB, so (2 inputs x 2 pipeline buffers) stays well inside v7x's 64 MiB.
    for cand in (2048, 1024, 512, 256, 128):
        if c % cand == 0 and b * hw * cand * itemsize <= budget_bytes:
            return cand
    return c  # fall back to the whole C axis (tiny / non-128-multiple channels)


def encoder_cnn_forward(features_nchw, w_ce, bias_e, gamma_e, beta_e,
                        *, c_tile=None, e_pad_to=128):
    """Global-avg-pool + flatten + Linear + train-mode BatchNorm1d.

    features_nchw: (B, C, H, W) backbone feature map (NCHW, PyTorch layout).
    w_ce:          (C, E) Linear weight, already transposed (in_features, embed).
    bias_e:        (E,) Linear bias — algebraically cancelled by train-mode BN,
                   so it is not DMA'd into the kernel.
    gamma_e/beta_e:(E,) BatchNorm1d affine parameters.
    """
    del bias_e  # cancelled exactly by the batch-mean subtraction below
    B, C, H, W = features_nchw.shape
    HW = H * W
    E = w_ce.shape[1]

    # Lane-dense layout: put channels last. (A real pipeline would have the
    # backbone emit NHWC directly; this transpose is a cheap XLA op outside.)
    feat = jnp.transpose(features_nchw, (0, 2, 3, 1)).reshape(B, HW, C)
    if feat.dtype == jnp.float32:
        feat = feat.astype(jnp.bfloat16)  # HBM-bound on this input: halve bytes
    cdt = feat.dtype
    itemsize = jnp.dtype(cdt).itemsize

    # Pad embed dim to a full lane width: unmasked output stores + real MXU N.
    E_pad = max(e_pad_to, ((E + 127) // 128) * 128)
    w_p = jnp.zeros((C, E_pad), cdt).at[:, :E].set(w_ce.astype(cdt))
    g_p = jnp.zeros((1, E_pad), jnp.float32).at[0, :E].set(
        gamma_e.astype(jnp.float32))
    b_p = jnp.zeros((1, E_pad), jnp.float32).at[0, :E].set(
        beta_e.astype(jnp.float32))

    if c_tile is None:
        c_tile = _pick_c_tile(C, B, HW, itemsize)
    assert C % c_tile == 0, "c_tile must divide the channel dimension"
    n_k = C // c_tile

    feat_tile_bytes = B * HW * c_tile * itemsize
    w_tile_bytes = c_tile * E_pad * itemsize
    out_bytes = B * E_pad * 4
    vmem_need = 2 * (feat_tile_bytes + w_tile_bytes) + 3 * out_bytes + 2 * E_pad * 4
    vmem_limit = int(min(max(2 * vmem_need, 16 * 2**20), 64 * 2**20))

    kernel = functools.partial(_encoder_cnn_kernel, inv_hw=1.0 / HW)

    out_padded = pl.pallas_call(
        kernel,
        out_shape=jax.ShapeDtypeStruct((B, E_pad), jnp.float32),
        grid_spec=pltpu.PrefetchScalarGridSpec(
            num_scalar_prefetch=0,
            grid=(n_k,),  # reduction over channel tiles
            in_specs=[
                pl.BlockSpec((B, HW, c_tile), lambda k: (0, 0, k)),
                pl.BlockSpec((c_tile, E_pad), lambda k: (k, 0)),
                pl.BlockSpec((1, E_pad), lambda k: (0, 0)),
                pl.BlockSpec((1, E_pad), lambda k: (0, 0)),
            ],
            out_specs=pl.BlockSpec((B, E_pad), lambda k: (0, 0)),
            scratch_shapes=[pltpu.VMEM((B, E_pad), jnp.float32)],
        ),
        compiler_params=pltpu.CompilerParams(
            dimension_semantics=("arbitrary",),  # C is a reduction axis
            vmem_limit_bytes=vmem_limit,
        ),
        cost_estimate=pl.CostEstimate(
            flops=2 * B * HW * C * E_pad,
            transcendentals=0,
            bytes_accessed=(B * HW * C * itemsize
                            + C * E_pad * itemsize
                            + out_bytes),
        ),
    )(feat, w_p, g_p, b_p)

    return out_padded[:, :E]


if __name__ == "__main__":
    # Small deterministic shapes consistent with the module:
    #   backbone feature map B=2, C=256 (stand-in for resnet152's 2048), 4x4 spatial
    #   embed_size=14 (module default)
    B, C, H, W = 2, 256, 4, 4
    EMBED = 14

    key = jax.random.PRNGKey(0)
    k_feat, k_w, k_b = jax.random.split(key, 3)

    features = jax.random.normal(k_feat, (B, C, H, W), jnp.float32).astype(
        jnp.bfloat16)

    # nn.Linear default init: U(-1/sqrt(in), 1/sqrt(in))
    bound = 1.0 / jnp.sqrt(jnp.float32(C))
    w_ce = jax.random.uniform(k_w, (C, EMBED), jnp.float32, -bound, bound)
    bias_e = jax.random.uniform(k_b, (EMBED,), jnp.float32, -bound, bound)

    # Non-trivial BN affine params (PyTorch init would be ones/zeros).
    gamma_e = jnp.linspace(0.5, 1.5, EMBED, dtype=jnp.float32)
    beta_e = jnp.linspace(-0.2, 0.2, EMBED, dtype=jnp.float32)

    # Force c_tile=128 so the demo actually exercises the 2-step C reduction.
    out = encoder_cnn_forward(features, w_ce, bias_e, gamma_e, beta_e, c_tile=128)
    out = jax.block_until_ready(out)

    # Pure-JAX reference with full module semantics (including the Linear bias,
    # which train-mode BN cancels), using the same bf16-quantized inputs.
    feat_f32 = features.astype(jnp.float32)
    w_q = w_ce.astype(jnp.bfloat16).astype(jnp.float32)
    pooled = feat_f32.reshape(B, C, H * W).mean(-1)
    z = pooled @ w_q + bias_e
    mu = z.mean(0, keepdims=True)
    var = ((z - mu) ** 2).mean(0, keepdims=True)
    ref = gamma_e * (z - mu) / jnp.sqrt(var + _BN_EPS) + beta_e

    assert out.shape == (B, EMBED)
    assert jnp.allclose(out, ref, atol=2e-3, rtol=2e-3), float(
        jnp.max(jnp.abs(out - ref)))

    print("KERNEL_OK")
</pallas_src>

<mosaic_0001>
module attributes {stable_mosaic.version = 11 : i64} {
  func.func @_encoder_cnn_kernel(%arg0: i32, %arg1: memref<2x16x128xbf16, #tpu.memory_space<vmem>>, %arg2: memref<128x128xbf16, #tpu.memory_space<vmem>>, %arg3: memref<1x128xf32, #tpu.memory_space<vmem>>, %arg4: memref<1x128xf32, #tpu.memory_space<vmem>>, %arg5: memref<2x128xf32, #tpu.memory_space<vmem>>, %arg6: memref<2x128xf32, #tpu.memory_space<vmem>>) attributes {dimension_semantics = [#tpu.dimension_semantics<arbitrary>], iteration_bounds = array<i64: 2>, scalar_prefetch = 0 : i64, scratch_operands = 1 : i64, tpu.core_type = #tpu.core_type<tc>, window_params = [{transform_indices = @transform_0, window_bounds = array<i64: 2, 16, 128>}, {transform_indices = @transform_1, window_bounds = array<i64: 128, 128>}, {pipeline_mode = #tpu.pipeline_mode<synchronous>, transform_indices = @transform_2, window_bounds = array<i64: 1, 128>}, {pipeline_mode = #tpu.pipeline_mode<synchronous>, transform_indices = @transform_3, window_bounds = array<i64: 1, 128>}, {pipeline_mode = #tpu.pipeline_mode<synchronous>, transform_indices = @transform_4, window_bounds = array<i64: 2, 128>}]} {
    %c0_i32 = arith.constant 0 : i32
    %0 = arith.cmpi eq, %arg0, %c0_i32 : i32
    %1 = arith.extui %0 : i1 to i32
    %c0_i32_0 = arith.constant 0 : i32
    %2 = arith.cmpi ne, %1, %c0_i32_0 : i32
    scf.if %2 {
      %cst_11 = arith.constant 0.000000e+00 : f32
      %15 = vector.broadcast %cst_11 : f32 to vector<2x128xf32>
      %c0_12 = arith.constant 0 : index
      %c0_13 = arith.constant 0 : index
      %16 = vector.load %arg6[%c0_12, %c0_13] : memref<2x128xf32, #tpu.memory_space<vmem>>, vector<2x128xf32>
      tpu.vector_store %arg6[%c0_12, %c0_13], %15 {strides = array<i32>} : memref<2x128xf32, #tpu.memory_space<vmem>>, vector<2x128xf32>,
    } else {
    }
    %c0 = arith.constant 0 : index
    %c0_1 = arith.constant 0 : index
    %c0_2 = arith.constant 0 : index
    %3 = vector.load %arg1[%c0, %c0_1, %c0_2] : memref<2x16x128xbf16, #tpu.memory_space<vmem>>, vector<2x16x128xbf16>
    %4 = vector.shape_cast %3 : vector<2x16x128xbf16> to vector<32x128xbf16>
    %c0_3 = arith.constant 0 : index
    %c0_4 = arith.constant 0 : index
    %5 = vector.load %arg2[%c0_3, %c0_4] : memref<128x128xbf16, #tpu.memory_space<vmem>>, vector<128x128xbf16>
    %cst = arith.constant dense<0.000000e+00> : vector<32x128xf32>
    %6 = tpu.matmul %4, %5, %cst {dimension_numbers = #tpu.dot_dimension_numbers<[1], [0], [0], [1], [0, 0, 1, 1], [], []>} : vector<32x128xbf16>, vector<128x128xbf16>, vector<32x128xf32> -> vector<32x128xf32>
    %c0_5 = arith.constant 0 : index
    %c0_6 = arith.constant 0 : index
    %7 = vector.load %arg6[%c0_5, %c0_6] : memref<2x128xf32, #tpu.memory_space<vmem>>, vector<2x128xf32>
    %8 = vector.shape_cast %6 : vector<32x128xf32> to vector<2x16x128xf32>
    %cst_7 = arith.constant dense<0.000000e+00> : vector<2x128xf32>
    %9 = vector.multi_reduction <add>, %8, %cst_7 [1] : vector<2x16x128xf32> to vector<2x128xf32>
    %10 = arith.addf %7, %9 : vector<2x128xf32>
    %c0_8 = arith.constant 0 : index
    %c0_9 = arith.constant 0 : index
    %11 = vector.load %arg6[%c0_8, %c0_9] : memref<2x128xf32, #tpu.memory_space<vmem>>, vector<2x128xf32>
    tpu.vector_store %arg6[%c0_8, %c0_9], %10 {strides = array<i32>} : memref<2x128xf32, #tpu.memory_space<vmem>>, vector<2x128xf32>,
    %c1_i32 = arith.constant 1 : i32
    %12 = arith.cmpi eq, %arg0, %c1_i32 : i32
    %13 = arith.extui %12 : i1 to i32
    %c0_i32_10 = arith.constant 0 : i32
    %14 = arith.cmpi ne, %13, %c0_i32_10 : i32
    scf.if %14 {
      %c0_11 = arith.constant 0 : index
      %c0_12 = arith.constant 0 : index
      %15 = vector.load %arg6[%c0_11, %c0_12] : memref<2x128xf32, #tpu.memory_space<vmem>>, vector<2x128xf32>
      %cst_13 = arith.constant 6.250000e-02 : f32
      %16 = vector.broadcast %cst_13 : f32 to vector<2x128xf32>
      %17 = arith.mulf %15, %16 : vector<2x128xf32>
      %cst_14 = arith.constant dense<0.000000e+00> : vector<128xf32>
      %18 = vector.multi_reduction <add>, %17, %cst_14 [0] : vector<2x128xf32> to vector<128xf32>
      %19 = vector.shape_cast %18 : vector<128xf32> to vector<1x128xf32>
      %cst_15 = arith.constant 2.000000e+00 : f32
      %20 = vector.broadcast %cst_15 : f32 to vector<1x128xf32>
      %21 = arith.divf %19, %20 : vector<1x128xf32>
      %22 = vector.broadcast %21 : vector<1x128xf32> to vector<2x128xf32>
      %23 = arith.subf %17, %22 : vector<2x128xf32>
      %24 = arith.mulf %23, %23 : vector<2x128xf32>
      %cst_16 = arith.constant dense<0.000000e+00> : vector<128xf32>
      %25 = vector.multi_reduction <add>, %24, %cst_16 [0] : vector<2x128xf32> to vector<128xf32>
      %26 = vector.shape_cast %25 : vector<128xf32> to vector<1x128xf32>
      %cst_17 = arith.constant 2.000000e+00 : f32
      %27 = vector.broadcast %cst_17 : f32 to vector<1x128xf32>
      %28 = arith.divf %26, %27 : vector<1x128xf32>
      %c0_18 = arith.constant 0 : index
      %c0_19 = arith.constant 0 : index
      %29 = vector.load %arg3[%c0_18, %c0_19] : memref<1x128xf32, #tpu.memory_space<vmem>>, vector<1x128xf32>
      %cst_20 = arith.constant 9.99999974E-6 : f32
      %30 = vector.broadcast %cst_20 : f32 to vector<1x128xf32>
      %31 = arith.addf %28, %30 : vector<1x128xf32>
      %32 = math.rsqrt %31 : vector<1x128xf32>
      %33 = arith.mulf %29, %32 : vector<1x128xf32>
      %34 = vector.broadcast %33 : vector<1x128xf32> to vector<2x128xf32>
      %35 = arith.mulf %23, %34 : vector<2x128xf32>
      %c0_21 = arith.constant 0 : index
      %c0_22 = arith.constant 0 : index
      %36 = vector.load %arg4[%c0_21, %c0_22] : memref<1x128xf32, #tpu.memory_space<vmem>>, vector<1x128xf32>
      %37 = vector.broadcast %36 : vector<1x128xf32> to vector<2x128xf32>
      %38 = arith.addf %35, %37 : vector<2x128xf32>
      %c0_23 = arith.constant 0 : index
      %c0_24 = arith.constant 0 : index
      %39 = vector.load %arg5[%c0_23, %c0_24] : memref<2x128xf32, #tpu.memory_space<vmem>>, vector<2x128xf32>
      tpu.vector_store %arg5[%c0_23, %c0_24], %38 {strides = array<i32>} : memref<2x128xf32, #tpu.memory_space<vmem>>, vector<2x128xf32>,
    } else {
    }
    return
  }
  func.func @transform_0(%arg0: i32) -> (i32, i32, i32) {
    %c0_i32 = arith.constant 0 : i32
    %c0_i32_0 = arith.constant 0 : i32
    %c0_i32_1 = arith.constant 0 : i32
    return %c0_i32, %c0_i32_0, %arg0 : i32, i32, i32
  }
  func.func @transform_1(%arg0: i32) -> (i32, i32) {
    %c0_i32 = arith.constant 0 : i32
    %c0_i32_0 = arith.constant 0 : i32
    return %arg0, %c0_i32 : i32, i32
  }
  func.func @transform_2(%arg0: i32) -> (i32, i32) {
    %c0_i32 = arith.constant 0 : i32
    %c0_i32_0 = arith.constant 0 : i32
    %c0_i32_1 = arith.constant 0 : i32
    return %c0_i32, %c0_i32_0 : i32, i32
  }
  func.func @transform_3(%arg0: i32) -> (i32, i32) {
    %c0_i32 = arith.constant 0 : i32
    %c0_i32_0 = arith.constant 0 : i32
    %c0_i32_1 = arith.constant 0 : i32
    return %c0_i32, %c0_i32_0 : i32, i32
  }
  func.func @transform_4(%arg0: i32) -> (i32, i32) {
    %c0_i32 = arith.constant 0 : i32
    %c0_i32_0 = arith.constant 0 : i32
    %c0_i32_1 = arith.constant 0 : i32
    return %c0_i32, %c0_i32_0 : i32, i32
  }
}

</mosaic_0001>

<llo_original>
// kernel: tpu_custom_call.1
$region0: #{tpu_custom_call.1}
  #allocation0 [shape = 'u32[]', space=smem, size = 0x4, offset = 0x4, fixed_abs, tag = 'smem constant byte address 0x4 - core index']
  #allocation1 [shape = 'u32[72,128]{1,0:T(1,128)}', space=vmem, size = 0x9000, scoped, tag = 'internal scratch']
  #allocation2 [shape = 'f32[2,128]{1,0:T(2,128)}', space=vmem, size = 0x400, scoped, tag = 'scratch operand']
  %s0 = inlined_call_operand.hbm [shape: bf16[2,16,256], index: 0, kind: input, shape index: {}]
  %s1 = inlined_call_operand.hbm [shape: bf16[256,128], index: 1, kind: input, shape index: {}]
  %s2 = inlined_call_operand.vmem [shape: f32[1,128], index: 2, kind: input, shape index: {}]
  %s3 = inlined_call_operand.vmem [shape: f32[1,128], index: 3, kind: input, shape index: {}]
  %s4 = inlined_call_operand.hbm [shape: f32[2,128], index: 4, kind: output, shape index: {}]
  %s5 = sld [smem:[#allocation0]]
  $region65: #{tpu_custom_call.1} parent=0
    _
  %s7 = ssub.s32 1, %s5
  %s8 = scalar_select 0, %s7, %s5
  $region1: #{tpu_custom_call.1} parent=0
    #allocation3 [shape = 'u8[16384]{0}', space=vmem, size = 0x4000, scoped, tag = 'input window, operand 0']
    #allocation4 [shape = 's32[2]{0}', space=sflag, size = 0x8, scoped, tag = 'scoped memory for tpu_custom_call.1']
    #allocation5 [shape = 's32[2]{0}', space=sflag, size = 0x8, scoped, tag = 'scoped memory for tpu_custom_call.1']
    #allocation6 [shape = 'u8[65536]{0}', space=vmem, size = 0x10000, scoped, tag = 'input window, operand 1']
    #allocation7 [shape = 's32[2]{0}', space=sflag, size = 0x8, scoped, tag = 'scoped memory for tpu_custom_call.1']
    #allocation8 [shape = 'u8[1024]{0}', space=vmem, size = 0x400, scoped, tag = 'output window, operand 0, single buffered']
    %9 = vsyncpa [#allocation4], 0
    %s10 = scalar_lea.sflag [#allocation4], 1
    %11 = vsyncpa %s10, 0
    %12 = vsyncpa [#allocation7], 0
    %s13 = scalar_lea.sflag [#allocation7], 1
    %14 = vsyncpa %s13, 0
    %15 = vsyncpa [#allocation5], 0
    loop: start=0, step=1, limit=4
    $region2: #{tpu_custom_call.1} parent=1 // loop_pre_header
      _
    $region3: #{tpu_custom_call.1} parent=1 // loop_header
      %s17 = sphi 0, %s21
      %p18 = scmp.ge.s32.totalorder %s17, 4
      %s27 = sphi 0, %s29
      %s30 = sphi 0, %s27
      %s31 = sphi 0, %s30
      %s47 = sphi 0, %s31
      %s53 = sphi 0, %s55
      %s56 = sphi 0, %s53
      %s57 = sphi 0, %s56
      %s73 = sphi 0, %s57
      %s77 = sphi 0, %s77
      %s79 = sphi 0, %s77
      %s80 = sphi 0, %s79
      %s94 = sphi 0, %s80
      %s98 = sphi 0, %s98
      %s100 = sphi 0, %s98
      %s101 = sphi 0, %s100
      %s115 = sphi 0, %s101
      %s119 = sphi 0, %s119
      %s121 = sphi 0, %s119
      %s122 = sphi 0, %s121
      %s136 = sphi 0, %s122
    $region4: #{tpu_custom_call.1} parent=1 // loop_header_branch
      %20 = sbr.rel (%p18) target = $region8
    $region5: #{tpu_custom_call.1} parent=1 // loop_body
      %s22 = ssub.s32 %s17, 1
      %s23 = ssub.s32 %s17, 2
      %s24 = sadd.s32 %s17, 1
      %s25 = ssub.s32 %s17, %s24
      %p26 = scmp.eq.s32.totalorder %s25, 0
      %s28 = sadd.s32 %s27, 1
      %s29 = scalar_select %p26, %s27, %s28
      %p32 = pneg %p26
      %p33 = scmp.eq.s32.totalorder %s17, 1
      %p34 = por %p32, %p33
      %p35 = scmp.ne.s32.totalorder %s27, %s30
      %p36 = scmp.eq.s32.totalorder %s17, 0
      %p37 = por %p35, %p36
      %p38 = scmp.ne.s32.totalorder %s27, %s30
      %p39 = scmp.eq.s32.totalorder %s22, 1
      %p40 = por %p38, %p39
      %p41 = scmp.ne.s32.totalorder %s30, %s31
      %p42 = scmp.eq.s32.totalorder %s22, 0
      %p43 = por %p41, %p42
      %p44 = scmp.ne.s32.totalorder %s30, %s31
      %p45 = scmp.eq.s32.totalorder %s23, 1
      %p46 = por %p44, %p45
      %p48 = scmp.ne.s32.totalorder %s31, %s47
      %p49 = scmp.eq.s32.totalorder %s23, 0
      %p50 = por %p48, %p49
      %s51 = ssub.s32 %s17, %s24
      %p52 = scmp.eq.s32.totalorder %s51, 0
      %s54 = sadd.s32 %s53, 1
      %s55 = scalar_select %p52, %s53, %s54
      %p58 = pneg %p52
      %p59 = scmp.eq.s32.totalorder %s17, 1
      %p60 = por %p58, %p59
      %p61 = scmp.ne.s32.totalorder %s53, %s56
      %p62 = scmp.eq.s32.totalorder %s17, 0
      %p63 = por %p61, %p62
      %p64 = scmp.ne.s32.totalorder %s53, %s56
      %p65 = scmp.eq.s32.totalorder %s22, 1
      %p66 = por %p64, %p65
      %p67 = scmp.ne.s32.totalorder %s56, %s57
      %p68 = scmp.eq.s32.totalorder %s22, 0
      %p69 = por %p67, %p68
      %p70 = scmp.ne.s32.totalorder %s56, %s57
      %p71 = scmp.eq.s32.totalorder %s23, 1
      %p72 = por %p70, %p71
      %p74 = scmp.ne.s32.totalorder %s57, %s73
      %p75 = scmp.eq.s32.totalorder %s23, 0
      %p76 = por %p74, %p75
      %s78 = sadd.s32 %s77, 1
      %p81 = scmp.eq.s32.totalorder %s17, 1
      %p82 = scmp.ne.s32.totalorder %s77, %s79
      %p83 = scmp.eq.s32.totalorder %s17, 0
      %p84 = por %p82, %p83
      %p85 = scmp.ne.s32.totalorder %s77, %s79
      %p86 = scmp.eq.s32.totalorder %s22, 1
      %p87 = por %p85, %p86
      %p88 = scmp.ne.s32.totalorder %s79, %s80
      %p89 = scmp.eq.s32.totalorder %s22, 0
      %p90 = por %p88, %p89
      %p91 = scmp.ne.s32.totalorder %s79, %s80
      %p92 = scmp.eq.s32.totalorder %s23, 1
      %p93 = por %p91, %p92
      %p95 = scmp.ne.s32.totalorder %s80, %s94
      %p96 = scmp.eq.s32.totalorder %s23, 0
      %p97 = por %p95, %p96
      %s99 = sadd.s32 %s98, 1
      %p102 = scmp.eq.s32.totalorder %s17, 1
      %p103 = scmp.ne.s32.totalorder %s98, %s100
      %p104 = scmp.eq.s32.totalorder %s17, 0
      %p105 = por %p103, %p104
      %p106 = scmp.ne.s32.totalorder %s98, %s100
      %p107 = scmp.eq.s32.totalorder %s22, 1
      %p108 = por %p106, %p107
      %p109 = scmp.ne.s32.totalorder %s100, %s101
      %p110 = scmp.eq.s32.totalorder %s22, 0
      %p111 = por %p109, %p110
      %p112 = scmp.ne.s32.totalorder %s100, %s101
      %p113 = scmp.eq.s32.totalorder %s23, 1
      %p114 = por %p112, %p113
      %p116 = scmp.ne.s32.totalorder %s101, %s115
      %p117 = scmp.eq.s32.totalorder %s23, 0
      %p118 = por %p116, %p117
      %s120 = sadd.s32 %s119, 1
      %p123 = scmp.eq.s32.totalorder %s17, 1
      %p124 = scmp.ne.s32.totalorder %s119, %s121
      %p125 = scmp.eq.s32.totalorder %s17, 0
      %p126 = por %p124, %p125
      %p127 = scmp.ne.s32.totalorder %s119, %s121
      %p128 = scmp.eq.s32.totalorder %s22, 1
      %p129 = por %p127, %p128
      %p130 = scmp.ne.s32.totalorder %s121, %s122
      %p131 = scmp.eq.s32.totalorder %s22, 0
      %p132 = por %p130, %p131
      %p133 = scmp.ne.s32.totalorder %s121, %s122
      %p134 = scmp.eq.s32.totalorder %s23, 1
      %p135 = por %p133, %p134
      %p137 = scmp.ne.s32.totalorder %s122, %s136
      %p138 = scmp.eq.s32.totalorder %s23, 0
      %p139 = por %p137, %p138
      %p140 = scmp.le.s32.totalorder 1, %s17
      %p141 = scmp.lt.s32.totalorder %s17, 3
      %p142 = pnand %p140, %p141
      %p143 = pneg %p142
      // Predicated region
      $region9: #{tpu_custom_call.1} parent=5 // pred_check
        _
      $region10: #{tpu_custom_call.1} parent=5 // pred_check_branch
        %145 = sbr.rel (%p142) target = $region12
      $region11: #{tpu_custom_call.1} parent=5 // pred_region
        %s146 = ssub.s32 %s17, 1
        // Predicated region
        $region13: #{tpu_custom_call.1} parent=11 // pred_check
          %p147 = pneg %p90
        $region14: #{tpu_custom_call.1} parent=11 // pred_check_branch
          %149 = sbr.rel (%p147) target = $region16
        $region15: #{tpu_custom_call.1} parent=11 // pred_region
          _
        $region16: #{tpu_custom_call.1} parent=11 // pred_fallthru
          _
        // Predicated region
        $region17: #{tpu_custom_call.1} parent=11 // pred_check
          %p150 = pneg %p111
        $region18: #{tpu_custom_call.1} parent=11 // pred_check_branch
          %152 = sbr.rel (%p150) target = $region20
        $region19: #{tpu_custom_call.1} parent=11 // pred_region
          _
        $region20: #{tpu_custom_call.1} parent=11 // pred_fallthru
          _
      $region12: #{tpu_custom_call.1} parent=5 // pred_fallthru
        _
      %p153 = scmp.lt.s32.totalorder %s17, 2
      // Predicated region
      $region21: #{tpu_custom_call.1} parent=5 // pred_check
        %p154 = pneg %p153
      $region22: #{tpu_custom_call.1} parent=5 // pred_check_branch
        %156 = sbr.rel (%p154) target = $region24
      $region23: #{tpu_custom_call.1} parent=5 // pred_region
        // Predicated region
        $region25: #{tpu_custom_call.1} parent=23 // pred_check
          %p157 = pneg %p37
        $region26: #{tpu_custom_call.1} parent=23 // pred_check_branch
          %159 = sbr.rel (%p157) target = $region28
        $region27: #{tpu_custom_call.1} parent=23 // pred_region
          %s160 = sand.u32 %s27, 1
          %s161 = scalar_lea.sflag [#allocation4], %s160
          %s162 = sand.u32 %s27, 1
          %s163 = smul.addr %s162, 16
          %s164 = scalar_lea.vmem [#allocation3], %s163
          %166 = vsyncadd %s161, 0
          %s167 = smul.addr %s17, 4
          %s168 = scalar_lea.hbm %s0, %s167
          %s169 = sshll.u32 %s168, 4
          %s170 = int_to_ptr.hbm [resolvable:$true] %s169
          %s171 = sshll.u32 %s164, 4
          %s172 = int_to_ptr.vmem [resolvable:$true] %s171
          %177 = dma.hbm_to_vmem [thread:$0]  %s170, 256, %s172, %s161, 128, 64, 4
        $region28: #{tpu_custom_call.1} parent=23 // pred_fallthru
          _
        // Predicated region
        $region29: #{tpu_custom_call.1} parent=23 // pred_check
          %p178 = pneg %p63
        $region30: #{tpu_custom_call.1} parent=23 // pred_check_branch
          %180 = sbr.rel (%p178) target = $region32
        $region31: #{tpu_custom_call.1} parent=23 // pred_region
          %s181 = sand.u32 %s53, 1
          %s182 = scalar_lea.sflag [#allocation7], %s181
          %s183 = sand.u32 %s53, 1
          %s184 = smul.addr %s183, 64
          %s185 = scalar_lea.vmem [#allocation6], %s184
          %s186 = smul.u32 16, %s17
          %188 = vsyncadd %s182, 0
          %s189 = smul.addr %s186, 4
          %s190 = scalar_lea.hbm %s1, %s189
          %s191 = sshll.u32 %s190, 4
          %s192 = int_to_ptr.hbm [resolvable:$true] %s191
          %s193 = sshll.u32 %s185, 4
          %s194 = int_to_ptr.vmem [resolvable:$true] %s193
          %199 = dma.hbm_to_vmem [thread:$0]  %s192, 1024, %s194, %s182, 64, 64, 4
        $region32: #{tpu_custom_call.1} parent=23 // pred_fallthru
          _
      $region24: #{tpu_custom_call.1} parent=5 // pred_fallthru
        _
      %p200 = scmp.le.s32.totalorder 1, %s17
      %p201 = scmp.lt.s32.totalorder %s17, 3
      %p202 = pnand %p200, %p201
      %p203 = pneg %p202
      // Predicated region
      $region33: #{tpu_custom_call.1} parent=5 // pred_check
        _
      $region34: #{tpu_custom_call.1} parent=5 // pred_check_branch
        %205 = sbr.rel (%p202) target = $region36
      $region35: #{tpu_custom_call.1} parent=5 // pred_region
        %s206 = ssub.s32 %s17, 1
        %s207 = sand.u32 %s30, 1
        %s208 = scalar_lea.sflag [#allocation4], %s207
        %s209 = sand.u32 %s30, 1
        %s210 = smul.addr %s209, 16
        %s211 = scalar_lea.vmem [#allocation3], %s210
        // Predicated region
        $region37: #{tpu_custom_call.1} parent=35 // pred_check
          %p212 = pneg %p43
        $region38: #{tpu_custom_call.1} parent=35 // pred_check_branch
          %214 = sbr.rel (%p212) target = $region40
        $region39: #{tpu_custom_call.1} parent=35 // pred_region
          %216 = dma.done %s208, 256
        $region40: #{tpu_custom_call.1} parent=35 // pred_fallthru
          _
        %s217 = sand.u32 %s56, 1
        %s218 = scalar_lea.sflag [#allocation7], %s217
        %s219 = sand.u32 %s56, 1
        %s220 = smul.addr %s219, 64
        %s221 = scalar_lea.vmem [#allocation6], %s220
        // Predicated region
        $region41: #{tpu_custom_call.1} parent=35 // pred_check
          %p222 = pneg %p69
        $region42: #{tpu_custom_call.1} parent=35 // pred_check_branch
          %224 = sbr.rel (%p222) target = $region44
        $region43: #{tpu_custom_call.1} parent=35 // pred_region
          %226 = dma.done %s218, 1024
        $region44: #{tpu_custom_call.1} parent=35 // pred_fallthru
          _
        %s227 = sand.u32 %s30, 1
        %s228 = scalar_lea.sflag [#allocation4], %s227
        %s229 = sand.u32 %s30, 1
        %s230 = smul.addr %s229, 16
        %s231 = scalar_lea.vmem [#allocation3], %s230
        %p232 = pneg %p43
        %p233 = pneg %p40
        %s234 = sand.u32 %s56, 1
        %s235 = scalar_lea.sflag [#allocation7], %s234
        %s236 = sand.u32 %s56, 1
        %s237 = smul.addr %s236, 64
        %s238 = scalar_lea.vmem [#allocation6], %s237
        %p239 = pneg %p69
        %p240 = pneg %p66
        %p241 = pneg %p90
        %p242 = pneg %p87
        %p243 = pneg %p111
        %p244 = pneg %p108
        %p245 = pneg %p132
        %p246 = pneg %p129
        %s247 = smul.u32 16, %s22
        %p248 = scmp.eq.s32.totalorder %s22, 0
        // Predicated region
        $region45: #{tpu_custom_call.1} parent=35 // pred_check
          %p249 = pneg %p248
        $region46: #{tpu_custom_call.1} parent=35 // pred_check_branch
          %251 = sbr.rel (%p249) target = $region48
        $region47: #{tpu_custom_call.1} parent=35 // pred_region
          %252 = vst [vmem:[#allocation2] sm:$0x3] 0.0
        $region48: #{tpu_custom_call.1} parent=35 // pred_fallthru
          _
        %v253 = vld [vmem:[%s211] sm:$0xf]
        %v254 = vld [vmem:[%s211 + $0x4] sm:$0xf]
        %v255 = vld [vmem:[%s211 + $0x8] sm:$0xf]
        %v256 = vld [vmem:[%s211 + $0xc] sm:$0xf]
        %v257 = vld [vmem:[%s221] sm:$0xf]
        %v258 = vld [vmem:[%s221 + $0x4] sm:$0xf]
        %v259 = vld [vmem:[%s221 + $0x8] sm:$0xf]
        %v260 = vld [vmem:[%s221 + $0xc] sm:$0xf]
        %v261 = vld [vmem:[%s221 + $0x10] sm:$0xf]
        %v262 = vld [vmem:[%s221 + $0x14] sm:$0xf]
        %v263 = vld [vmem:[%s221 + $0x18] sm:$0xf]
        %v264 = vld [vmem:[%s221 + $0x1c] sm:$0xf]
        %v265 = vld [vmem:[%s221 + $0x20] sm:$0xf]
        %v266 = vld [vmem:[%s221 + $0x24] sm:$0xf]
        %v267 = vld [vmem:[%s221 + $0x28] sm:$0xf]
        %v268 = vld [vmem:[%s221 + $0x2c] sm:$0xf]
        %v269 = vld [vmem:[%s221 + $0x30] sm:$0xf]
        %v270 = vld [vmem:[%s221 + $0x34] sm:$0xf]
        %v271 = vld [vmem:[%s221 + $0x38] sm:$0xf]
        %v272 = vld [vmem:[%s221 + $0x3c] sm:$0xf]
        %v277 = vunpack.c.l.b16 %v253
        %v278 = vunpack.c.l.b16 %v254
        %v279 = vunpack.c.l.b16 %v255
        %v280 = vunpack.c.l.b16 %v256
        %v281 = vpack.c.b16 %v278, %v277
        %v282 = vpack.c.b16 %v280, %v279
        %v301 = vunpack.c.l.b16 %v257
        %v302 = vunpack.c.l.b16 %v258
        %v303 = vunpack.c.l.b16 %v259
        %v304 = vunpack.c.l.b16 %v260
        %v305 = vunpack.c.l.b16 %v261
        %v306 = vunpack.c.l.b16 %v262
        %v307 = vunpack.c.l.b16 %v263
        %v308 = vunpack.c.l.b16 %v264
        %v309 = vunpack.c.l.b16 %v265
        %v310 = vunpack.c.l.b16 %v266
        %v311 = vunpack.c.l.b16 %v267
        %v312 = vunpack.c.l.b16 %v268
        %v313 = vunpack.c.l.b16 %v269
        %v314 = vunpack.c.l.b16 %v270
        %v315 = vunpack.c.l.b16 %v271
        %v316 = vunpack.c.l.b16 %v272
        %v317 = vpack.c.b16 %v302, %v301
        %v318 = vpack.c.b16 %v304, %v303
        %v319 = vpack.c.b16 %v306, %v305
        %v320 = vpack.c.b16 %v308, %v307
        %v321 = vpack.c.b16 %v310, %v309
        %v322 = vpack.c.b16 %v312, %v311
        %v323 = vpack.c.b16 %v314, %v313
        %v324 = vpack.c.b16 %v316, %v315
        %333 = vmatpush.bf16.msra.mxu0 %v324
        %334 = vmatpush.bf16.msra.mxu0 %v323
        %335 = vmatpush.bf16.msra.mxu0 %v322
        %336 = vmatpush.bf16.msra.mxu0 %v321
        %337 = vmatpush.bf16.msra.mxu0 %v320
        %338 = vmatpush.bf16.msra.mxu0 %v319
        %339 = vmatpush.bf16.msra.mxu0 %v318
        %340 = vmatpush.bf16.msra.mxu0 %v317
        %341 = vmatmul.bf16.gmra.mxu0 %v281
        %v342 = vpop.f32.mrf.mxu0
        %v343 = vadd.f32 0.0, %v342
        %v344 = vpop.f32.mrf.mxu0
        %v345 = vadd.f32 0.0, %v344
        %346 = vmatmul.bf16.gmra.mxu0 %v282
        %v347 = vpop.f32.mrf.mxu0
        %v348 = vadd.f32 0.0, %v347
        %v349 = vpop.f32.mrf.mxu0
        %v350 = vadd.f32 0.0, %v349
        %351 = vdwg.mxu0
        %v352 = vld [vmem:[#allocation2] sm:$0x3]
        %v353 = vadd.f32 %v343, %v345
        %v354 = vrot.slane %v353, 4
        %v355 = vadd.f32 %v353, %v354
        %v356 = vrot.slane %v355, 2
        %v357 = vadd.f32 %v355, %v356
        %v358 = vrot.slane %v357, 1
        %v359 = vadd.f32 %v357, %v358
        %v360 = vadd.f32 %v348, %v350
        %v361 = vrot.slane %v360, 4
        %v362 = vadd.f32 %v360, %v361
        %v363 = vrot.slane %v362, 2
        %v364 = vadd.f32 %v362, %v363
        %v365 = vrot.slane %v364, 1
        %v366 = vadd.f32 %v364, %v365
        %vm369 = vcmask 1041409
        %v370 = vsel %vm369, %v366, %v359
        %v372 = vadd.f32 %v352, %v370
        %373 = vst [vmem:[#allocation2] sm:$0x3] %v372
        %p374 = scmp.eq.s32.totalorder %s22, 1
        // Predicated region
        $region49: #{tpu_custom_call.1} parent=35 // pred_check
          %p375 = pneg %p374
        $region50: #{tpu_custom_call.1} parent=35 // pred_check_branch
          %377 = sbr.rel (%p375) target = $region52
        $region51: #{tpu_custom_call.1} parent=35 // pred_region
          %v378 = vld [vmem:[#allocation2] sm:$0x3]
          %v379 = vmul.f32 %v378, 0.0625
          %vm380 = vcmask 1041408
          %v381 = vsel %vm380, %v379, 0.0
          %v382 = vrot.slane %v381, 4
          %v383 = vadd.f32 %v381, %v382
          %v384 = vrot.slane %v383, 2
          %v385 = vadd.f32 %v383, %v384
          %v386 = vrot.slane %v385, 1
          %v387 = vadd.f32 %v385, %v386
          %v388 = vrcp.pop 2.0
          %v389 = vmul.f32 2.0, %v388
          %v390 = vsub.f32 1.0, %v389
          %v391 = vmul.f32 %v388, %v390
          %v392 = vadd.f32 %v388, %v391
          %vm393 = vweird.f32 %v388
          %v394 = vsel %vm393, %v388, %v392
          %v395 = vmul.f32 %v387, %v394
          %v396 = vsub.f32 %v379, %v395
          %v397 = vmul.f32 %v396, %v396
          %v398 = vsel %vm380, %v397, 0.0
          %v399 = vrot.slane %v398, 4
          %v400 = vadd.f32 %v398, %v399
          %v401 = vrot.slane %v400, 2
          %v402 = vadd.f32 %v400, %v401
          %v403 = vrot.slane %v402, 1
          %v404 = vadd.f32 %v402, %v403
          %v405 = vmul.f32 %v404, %v394
          %v406 = vld [vmem:[%s2] sm:$0x1]
          %v407 = vadd.f32 %v405, 1e-05
          %v408 = vrsqrt.pop %v407
          %v409 = vmul.f32 %v408, %v407
          %v410 = vmul.f32 %v409, %v408
          %v411 = vmul.f32 0.5, %v410
          %v412 = vsub.f32 1.5, %v411
          %v413 = vmul.f32 %v408, %v412
          %vm414 = vweird.f32 %v407
          %vm415 = vweird.f32 %v408
          %vm416 = vmor %vm414, %vm415
          %v417 = vsel %vm416, %v408, %v413
          %v418 = vmul.f32 %v406, %v417
          %v420 = vperm.slane %v418, 0
          %v422 = vmul.f32 %v396, %v420
          %v423 = vld [vmem:[%s3] sm:$0x1]
          %v425 = vperm.slane %v423, 0
          %v427 = vadd.f32 %v422, %v425
          %428 = vst [vmem:[#allocation8] sm:$0x3] %v427
        $region52: #{tpu_custom_call.1} parent=35 // pred_fallthru
          _
        // Predicated region
        $region53: #{tpu_custom_call.1} parent=35 // pred_check
          %p429 = pneg %p129
        $region54: #{tpu_custom_call.1} parent=35 // pred_check_branch
          %431 = sbr.rel (%p429) target = $region56
        $region55: #{tpu_custom_call.1} parent=35 // pred_region
          %433 = vsyncadd [#allocation5], 0
          %s435 = sshll.u32 [#allocation8], 4
          %s436 = int_to_ptr.vmem [resolvable:$true] %s435
          %s437 = sshll.u32 %s4, 4
          %s438 = int_to_ptr.hbm [resolvable:$true] %s437
          %440 = dma.vmem_to_hbm [thread:$0]  %s436, 32, %s438, [#allocation5]
        $region56: #{tpu_custom_call.1} parent=35 // pred_fallthru
          _
        // Predicated region
        $region57: #{tpu_custom_call.1} parent=35 // pred_check
          %p441 = pneg %p129
        $region58: #{tpu_custom_call.1} parent=35 // pred_check_branch
          %443 = sbr.rel (%p441) target = $region60
        $region59: #{tpu_custom_call.1} parent=35 // pred_region
          %445 = dma.done [#allocation5], 32
        $region60: #{tpu_custom_call.1} parent=35 // pred_fallthru
          _
      $region36: #{tpu_custom_call.1} parent=5 // pred_fallthru
        _
      %p446 = scmp.le.s32.totalorder 2, %s17
      // Predicated region
      $region61: #{tpu_custom_call.1} parent=5 // pred_check
        %p447 = pneg %p446
      $region62: #{tpu_custom_call.1} parent=5 // pred_check_branch
        %449 = sbr.rel (%p447) target = $region64
      $region63: #{tpu_custom_call.1} parent=5 // pred_region
        %s450 = ssub.s32 %s17, 2
      $region64: #{tpu_custom_call.1} parent=5 // pred_fallthru
        _
    $region6: #{tpu_custom_call.1} parent=1 // loop_footer
      %s21 = sadd.s32 1, %s17
    $region7: #{tpu_custom_call.1} parent=1 // loop_footer_branch
      %16 = sbr.rel target = $region3
    $region8: #{tpu_custom_call.1} parent=1 // loop_exit
      _
    %451 = vsyncpa [#allocation4], 1
    %s452 = scalar_lea.sflag [#allocation4], 1
    %453 = vsyncpa %s452, 1
    %454 = vsyncpa [#allocation7], 1
    %s455 = scalar_lea.sflag [#allocation7], 1
    %456 = vsyncpa %s455, 1
    %457 = vsyncpa [#allocation5], 1
    %s458 = scalar_lea.sflag [#allocation5], 1
    %459 = vsyncpa %s458, 1

</llo_original>
